<compile_context>
chip_gen: v6e
topology: v6e:2x2x1
jax: 0.10.0
libtpu: 0.0.40
codegen_flags: <defaults>
</compile_context>

<pallas_src>
import jax
import jax.numpy as jnp
from jax.experimental import pallas as pl
from jax.experimental.pallas import tpu as pltpu

CIN, COUT, GROUPS = 3, 6, 3
KH, KW = 1, 3
CPG = CIN // GROUPS     # input channels per group  = 1
OPG = COUT // GROUPS    # output channels per group = 2
LANE = 128


def _conv_sigmoid_kernel(w_ref, x_ref, o_ref):
    # w_ref: (KW, LANES)    VMEM  per-tap weight rows (lane = co*W + w, padded)
    # x_ref: (nb*H, LANES)  VMEM  input slab          (row = n*H + h, same lanes)
    # o_ref: (nb*H, LANES)  VMEM  output slab
    lanes = x_ref.shape[-1]
    x = x_ref[...]                                   # one dense load
    acc = x * w_ref[0:1, :]                          # tap kw = 0
    for kw in range(1, KW):                          # taps kw = 1 .. KW-1
        # output lane l must read x[l + kw]  ->  cyclic shift by (lanes - kw).
        shifted = pltpu.roll(x, shift=lanes - kw, axis=1)
        acc = acc + shifted * w_ref[kw:kw + 1, :]
    o_ref[...] = jax.nn.sigmoid(acc)                 # one EUP pass + one dense store


def conv_sigmoid(x, w, *, batch_tile=None):
    """Grouped conv (KH=1, KW=3, groups=3, no bias) + sigmoid.

    x: (N, CIN, H, W), w: (COUT, CPG, KH, KW) -> (N, COUT, H, W - KW + 1) f32.
    """
    N, cin, H, W = x.shape
    assert cin == CIN and w.shape == (COUT, CPG, KH, KW)
    # The slab layout below relies on these constants (flagged by review):
    assert CPG == 1 and KH == 1 and W >= KW
    HOUT, WOUT = H - KH + 1, W - KW + 1

    x = x.astype(jnp.float32)
    w = w.astype(jnp.float32)

    lanes = pl.cdiv(COUT * W, LANE) * LANE
    pad = lanes - COUT * W

    # ---- lane-dense packing (outside the kernel; plain XLA) -----------------
    # Input slab: row = n*H + h, lane = co*W + w; expanded channel co reads
    # original input channel co // OPG (grouped-conv mapping).
    x_exp = jnp.repeat(x, OPG, axis=1)                       # (N, COUT, H, W)
    slab = jnp.transpose(x_exp, (0, 2, 1, 3)).reshape(N * H, COUT * W)
    slab = jnp.pad(slab, ((0, 0), (0, pad)))                 # (N*H, lanes)

    # Per-tap weight rows: w_rows[kw, co*W + w] = w[co, 0, 0, kw].
    w_rows = jnp.repeat(jnp.transpose(w[:, 0, 0, :], (1, 0)), W, axis=1)
    w_rows = jnp.pad(w_rows, ((0, 0), (0, pad)))             # (KW, lanes)

    # ---- batch tiling --------------------------------------------------------
    if batch_tile is None:
        # >= 2 grid steps when N is even so the "parallel" batch axis feeds
        # both v7x TensorCores; the extra ~0.35 us step is noise on 1-TC parts.
        nb = N // 2 if (N % 2 == 0 and N > 1) else N
    else:
        nb = batch_tile
    assert N % nb == 0, "batch tile must divide N"

    # Keep double-buffered in+out blocks well under v7x's 64 MiB physical VMEM.
    budget = 48 << 20
    while nb > 1 and 4 * nb * H * lanes * 4 > budget:
        nb -= 1
        while N % nb:
            nb -= 1
    if (nb * H) % 8 != 0:
        nb = N          # full sublane extent is always a legal block shape
    block_bytes = nb * H * lanes * 4
    vmem_limit = int(min(64 << 20, max(4 << 20, 6 * block_bytes)))

    out_slab = pl.pallas_call(
        _conv_sigmoid_kernel,
        out_shape=jax.ShapeDtypeStruct((N * H, lanes), jnp.float32),
        grid_spec=pltpu.PrefetchScalarGridSpec(
            num_scalar_prefetch=0,
            grid=(N // nb,),
            in_specs=[
                pl.BlockSpec((KW, lanes), lambda b: (0, 0)),       # weight rows
                pl.BlockSpec((nb * H, lanes), lambda b: (b, 0)),   # input slab
            ],
            out_specs=pl.BlockSpec((nb * H, lanes), lambda b: (b, 0)),
        ),
        compiler_params=pltpu.CompilerParams(
            dimension_semantics=("parallel",),
            vmem_limit_bytes=vmem_limit,
        ),
    )(w_rows, slab)

    # ---- unpack (outside the kernel) ----------------------------------------
    out = out_slab[:, :COUT * W].reshape(N, H, COUT, W)
    out = jnp.transpose(out, (0, 2, 1, 3))[:, :, :HOUT, :WOUT]
    return out


def _reference(x, w):
    y = jax.lax.conv_general_dilated(
        x.astype(jnp.float32), w.astype(jnp.float32),
        window_strides=(1, 1), padding="VALID",
        dimension_numbers=("NCHW", "OIHW", "NCHW"),
        feature_group_count=GROUPS)
    return jax.nn.sigmoid(y)


if __name__ == "__main__":
    key = jax.random.PRNGKey(0)
    kx, kw_key = jax.random.split(key)

    # Small NCHW input consistent with the module's 4-D conv input.
    x = jax.random.normal(kx, (2, CIN, 16, 16), dtype=jnp.float32)
    # Grouped conv weights: (COUT, CIN/groups, KH, KW).
    w = 0.5 * jax.random.normal(kw_key, (COUT, CPG, KH, KW), dtype=jnp.float32)

    out = jax.block_until_ready(conv_sigmoid(x, w))
    ref = jax.block_until_ready(_reference(x, w))

    assert out.shape == (2, COUT, 16, 14), out.shape
    assert jnp.allclose(out, ref, atol=1e-5, rtol=1e-5), "mismatch vs XLA reference"

    print("KERNEL_OK")
</pallas_src>

<mosaic_0001>
module attributes {stable_mosaic.version = 11 : i64} {
  func.func @_conv_sigmoid_kernel(%arg0: i32, %arg1: memref<3x128xf32, #tpu.memory_space<vmem>>, %arg2: memref<16x128xf32, #tpu.memory_space<vmem>>, %arg3: memref<16x128xf32, #tpu.memory_space<vmem>>) attributes {dimension_semantics = [#tpu.dimension_semantics<parallel>], iteration_bounds = array<i64: 2>, scalar_prefetch = 0 : i64, scratch_operands = 0 : i64, tpu.core_type = #tpu.core_type<tc>, window_params = [{pipeline_mode = #tpu.pipeline_mode<synchronous>, transform_indices = @transform_0, window_bounds = array<i64: 3, 128>}, {transform_indices = @transform_1, window_bounds = array<i64: 16, 128>}, {transform_indices = @transform_2, window_bounds = array<i64: 16, 128>}]} {
    %c0 = arith.constant 0 : index
    %c0_0 = arith.constant 0 : index
    %0 = vector.load %arg2[%c0, %c0_0] : memref<16x128xf32, #tpu.memory_space<vmem>>, vector<16x128xf32>
    %c0_1 = arith.constant 0 : index
    %c0_2 = arith.constant 0 : index
    %1 = vector.load %arg1[%c0_1, %c0_2] : memref<3x128xf32, #tpu.memory_space<vmem>>, vector<1x128xf32>
    %2 = vector.broadcast %1 : vector<1x128xf32> to vector<16x128xf32>
    %3 = arith.mulf %0, %2 : vector<16x128xf32>
    %c127_i32 = arith.constant 127 : i32
    %4 = tpu.dynamic_rotate %0 by %c127_i32 dim 1 : vector<16x128xf32>, i32 -> vector<16x128xf32>
    %c1 = arith.constant 1 : index
    %c0_3 = arith.constant 0 : index
    %5 = vector.load %arg1[%c1, %c0_3] : memref<3x128xf32, #tpu.memory_space<vmem>>, vector<1x128xf32>
    %6 = vector.broadcast %5 : vector<1x128xf32> to vector<16x128xf32>
    %7 = arith.mulf %4, %6 : vector<16x128xf32>
    %8 = arith.addf %3, %7 : vector<16x128xf32>
    %c126_i32 = arith.constant 126 : i32
    %9 = tpu.dynamic_rotate %0 by %c126_i32 dim 1 : vector<16x128xf32>, i32 -> vector<16x128xf32>
    %c2 = arith.constant 2 : index
    %c0_4 = arith.constant 0 : index
    %10 = vector.load %arg1[%c2, %c0_4] : memref<3x128xf32, #tpu.memory_space<vmem>>, vector<1x128xf32>
    %11 = vector.broadcast %10 : vector<1x128xf32> to vector<16x128xf32>
    %12 = arith.mulf %9, %11 : vector<16x128xf32>
    %13 = arith.addf %8, %12 : vector<16x128xf32>
    %14 = arith.negf %13 : vector<16x128xf32>
    %15 = math.exp %14 : vector<16x128xf32>
    %cst = arith.constant 1.000000e+00 : f32
    %16 = vector.broadcast %cst : f32 to vector<16x128xf32>
    %17 = arith.addf %16, %15 : vector<16x128xf32>
    %18 = arith.divf %16, %17 : vector<16x128xf32>
    %c0_5 = arith.constant 0 : index
    %c0_6 = arith.constant 0 : index
    %19 = vector.load %arg3[%c0_5, %c0_6] : memref<16x128xf32, #tpu.memory_space<vmem>>, vector<16x128xf32>
    tpu.vector_store %arg3[%c0_5, %c0_6], %18 {strides = array<i32>} : memref<16x128xf32, #tpu.memory_space<vmem>>, vector<16x128xf32>,
    return
  }
  func.func @transform_0(%arg0: i32) -> (i32, i32) {
    %c0_i32 = arith.constant 0 : i32
    %c0_i32_0 = arith.constant 0 : i32
    %c0_i32_1 = arith.constant 0 : i32
    return %c0_i32, %c0_i32_0 : i32, i32
  }
  func.func @transform_1(%arg0: i32) -> (i32, i32) {
    %c0_i32 = arith.constant 0 : i32
    %c0_i32_0 = arith.constant 0 : i32
    return %arg0, %c0_i32 : i32, i32
  }
  func.func @transform_2(%arg0: i32) -> (i32, i32) {
    %c0_i32 = arith.constant 0 : i32
    %c0_i32_0 = arith.constant 0 : i32
    return %arg0, %c0_i32 : i32, i32
  }
}

</mosaic_0001>

<llo_original>
// kernel: tpu_custom_call.1
$region0: #{tpu_custom_call.1}
  #allocation0 [shape = 'u32[]', space=smem, size = 0x4, offset = 0x4, fixed_abs, tag = 'smem constant byte address 0x4 - core index']
  #allocation1 [shape = 'u32[144,128]{1,0:T(1,128)}', space=vmem, size = 0x12000, scoped, tag = 'internal scratch']
  %s0 = inlined_call_operand.hbm [shape: f32[3,128], index: 0, kind: input, shape index: {}]
  %s1 = inlined_call_operand.hbm [shape: f32[32,128], index: 1, kind: input, shape index: {}]
  %s2 = inlined_call_operand.hbm [shape: f32[32,128], index: 2, kind: output, shape index: {}]
  %s3 = sld [smem:[#allocation0]]
  $region49: #{tpu_custom_call.1} parent=0
    _
  %s5 = ssub.s32 1, %s3
  %s6 = scalar_select 0, %s5, %s3
  $region1: #{tpu_custom_call.1} parent=0
    #allocation2 [shape = 'u8[2048]{0}', space=vmem, size = 0x800, scoped, tag = 'input window, operand 0, single buffered']
    #allocation3 [shape = 's32[2]{0}', space=sflag, size = 0x8, scoped, tag = 'scoped memory for tpu_custom_call.1']
    #allocation4 [shape = 's32[2]{0}', space=sflag, size = 0x8, scoped, tag = 'scoped memory for tpu_custom_call.1']
    #allocation5 [shape = 'u8[16384]{0}', space=vmem, size = 0x4000, scoped, tag = 'input window, operand 1']
    #allocation6 [shape = 's32[2]{0}', space=sflag, size = 0x8, scoped, tag = 'scoped memory for tpu_custom_call.1']
    #allocation7 [shape = 'u8[16384]{0}', space=vmem, size = 0x4000, scoped, tag = 'output window, operand 0']
    %7 = vsyncpa [#allocation3], 0
    %8 = vsyncpa [#allocation6], 0
    %s9 = scalar_lea.sflag [#allocation6], 1
    %10 = vsyncpa %s9, 0
    %11 = vsyncpa [#allocation4], 0
    %s12 = scalar_lea.sflag [#allocation4], 1
    %13 = vsyncpa %s12, 0
    loop: start=0, step=1, limit=4
    $region2: #{tpu_custom_call.1} parent=1 // loop_pre_header
      _
    $region3: #{tpu_custom_call.1} parent=1 // loop_header
      %s15 = sphi 0, %s19
      %p16 = scmp.ge.s32.totalorder %s15, 4
      %s23 = sphi 0, %s23
      %s25 = sphi 0, %s23
      %s26 = sphi 0, %s25
      %s40 = sphi 0, %s26
      %s46 = sphi 0, %s48
      %s49 = sphi 0, %s46
      %s50 = sphi 0, %s49
      %s66 = sphi 0, %s50
      %s72 = sphi 0, %s74
      %s75 = sphi 0, %s72
      %s76 = sphi 0, %s75
      %s92 = sphi 0, %s76
    $region4: #{tpu_custom_call.1} parent=1 // loop_header_branch
      %18 = sbr.rel (%p16) target = $region8
    $region5: #{tpu_custom_call.1} parent=1 // loop_body
      %s20 = ssub.s32 %s15, 1
      %s21 = ssub.s32 %s15, 2
      %s22 = sadd.s32 %s15, 1
      %s24 = sadd.s32 %s23, 1
      %p27 = scmp.eq.s32.totalorder %s15, 1
      %p28 = scmp.ne.s32.totalorder %s23, %s25
      %p29 = scmp.eq.s32.totalorder %s15, 0
      %p30 = por %p28, %p29
      %p31 = scmp.ne.s32.totalorder %s23, %s25
      %p32 = scmp.eq.s32.totalorder %s20, 1
      %p33 = por %p31, %p32
      %p34 = scmp.ne.s32.totalorder %s25, %s26
      %p35 = scmp.eq.s32.totalorder %s20, 0
      %p36 = por %p34, %p35
      %p37 = scmp.ne.s32.totalorder %s25, %s26
      %p38 = scmp.eq.s32.totalorder %s21, 1
      %p39 = por %p37, %p38
      %p41 = scmp.ne.s32.totalorder %s26, %s40
      %p42 = scmp.eq.s32.totalorder %s21, 0
      %p43 = por %p41, %p42
      %s44 = ssub.s32 %s15, %s22
      %p45 = scmp.eq.s32.totalorder %s44, 0
      %s47 = sadd.s32 %s46, 1
      %s48 = scalar_select %p45, %s46, %s47
      %p51 = pneg %p45
      %p52 = scmp.eq.s32.totalorder %s15, 1
      %p53 = por %p51, %p52
      %p54 = scmp.ne.s32.totalorder %s46, %s49
      %p55 = scmp.eq.s32.totalorder %s15, 0
      %p56 = por %p54, %p55
      %p57 = scmp.ne.s32.totalorder %s46, %s49
      %p58 = scmp.eq.s32.totalorder %s20, 1
      %p59 = por %p57, %p58
      %p60 = scmp.ne.s32.totalorder %s49, %s50
      %p61 = scmp.eq.s32.totalorder %s20, 0
      %p62 = por %p60, %p61
      %p63 = scmp.ne.s32.totalorder %s49, %s50
      %p64 = scmp.eq.s32.totalorder %s21, 1
      %p65 = por %p63, %p64
      %p67 = scmp.ne.s32.totalorder %s50, %s66
      %p68 = scmp.eq.s32.totalorder %s21, 0
      %p69 = por %p67, %p68
      %s70 = ssub.s32 %s15, %s22
      %p71 = scmp.eq.s32.totalorder %s70, 0
      %s73 = sadd.s32 %s72, 1
      %s74 = scalar_select %p71, %s72, %s73
      %p77 = pneg %p71
      %p78 = scmp.eq.s32.totalorder %s15, 1
      %p79 = por %p77, %p78
      %p80 = scmp.ne.s32.totalorder %s72, %s75
      %p81 = scmp.eq.s32.totalorder %s15, 0
      %p82 = por %p80, %p81
      %p83 = scmp.ne.s32.totalorder %s72, %s75
      %p84 = scmp.eq.s32.totalorder %s20, 1
      %p85 = por %p83, %p84
      %p86 = scmp.ne.s32.totalorder %s75, %s76
      %p87 = scmp.eq.s32.totalorder %s20, 0
      %p88 = por %p86, %p87
      %p89 = scmp.ne.s32.totalorder %s75, %s76
      %p90 = scmp.eq.s32.totalorder %s21, 1
      %p91 = por %p89, %p90
      %p93 = scmp.ne.s32.totalorder %s76, %s92
      %p94 = scmp.eq.s32.totalorder %s21, 0
      %p95 = por %p93, %p94
      %p96 = scmp.le.s32.totalorder 1, %s15
      %p97 = scmp.lt.s32.totalorder %s15, 3
      %p98 = pnand %p96, %p97
      %p99 = pneg %p98
      // Predicated region
      $region9: #{tpu_custom_call.1} parent=5 // pred_check
        _
      $region10: #{tpu_custom_call.1} parent=5 // pred_check_branch
        %101 = sbr.rel (%p98) target = $region12
      $region11: #{tpu_custom_call.1} parent=5 // pred_region
        %s102 = ssub.s32 %s15, 1
        // Predicated region
        $region13: #{tpu_custom_call.1} parent=11 // pred_check
          %p103 = pneg %p36
        $region14: #{tpu_custom_call.1} parent=11 // pred_check_branch
          %105 = sbr.rel (%p103) target = $region16
        $region15: #{tpu_custom_call.1} parent=11 // pred_region
          %s107 = ssub.s32 64, 64
          %108 = vsyncadd [#allocation3], %s107
          %s110 = sshll.u32 [#allocation2], 4
          %s111 = int_to_ptr.vmem [resolvable:$true] %s110
          %113 = dma.hbm_to_vmem [thread:$0]  %s0, 64, %s111, [#allocation3]
        $region16: #{tpu_custom_call.1} parent=11 // pred_fallthru
          _
      $region12: #{tpu_custom_call.1} parent=5 // pred_fallthru
        _
      %p114 = scmp.lt.s32.totalorder %s15, 2
      // Predicated region
      $region17: #{tpu_custom_call.1} parent=5 // pred_check
        %p115 = pneg %p114
      $region18: #{tpu_custom_call.1} parent=5 // pred_check_branch
        %117 = sbr.rel (%p115) target = $region20
      $region19: #{tpu_custom_call.1} parent=5 // pred_region
        // Predicated region
        $region21: #{tpu_custom_call.1} parent=19 // pred_check
          %p118 = pneg %p56
        $region22: #{tpu_custom_call.1} parent=19 // pred_check_branch
          %120 = sbr.rel (%p118) target = $region24
        $region23: #{tpu_custom_call.1} parent=19 // pred_region
          %s121 = sand.u32 %s46, 1
          %s122 = scalar_lea.sflag [#allocation6], %s121
          %s123 = sand.u32 %s46, 1
          %s124 = smul.addr %s123, 16
          %s125 = scalar_lea.vmem [#allocation5], %s124
          %s126 = smul.u32 2, %s15
          %s128 = ssub.s32 256, 256
          %129 = vsyncadd %s122, %s128
          %s130 = smul.addr %s126, 128
          %s131 = scalar_lea.hbm %s1, %s130
          %s132 = sshll.u32 %s125, 4
          %s133 = int_to_ptr.vmem [resolvable:$true] %s132
          %138 = dma.hbm_to_vmem [thread:$0]  %s131, 256, %s133, %s122, 128, 128, 8
        $region24: #{tpu_custom_call.1} parent=19 // pred_fallthru
          _
      $region20: #{tpu_custom_call.1} parent=5 // pred_fallthru
        _
      %p139 = scmp.le.s32.totalorder 1, %s15
      %p140 = scmp.lt.s32.totalorder %s15, 3
      %p141 = pnand %p139, %p140
      %p142 = pneg %p141
      // Predicated region
      $region25: #{tpu_custom_call.1} parent=5 // pred_check
        _
      $region26: #{tpu_custom_call.1} parent=5 // pred_check_branch
        %144 = sbr.rel (%p141) target = $region28
      $region27: #{tpu_custom_call.1} parent=5 // pred_region
        %s145 = ssub.s32 %s15, 1
        // Predicated region
        $region29: #{tpu_custom_call.1} parent=27 // pred_check
          %p146 = pneg %p36
        $region30: #{tpu_custom_call.1} parent=27 // pred_check_branch
          %148 = sbr.rel (%p146) target = $region32
        $region31: #{tpu_custom_call.1} parent=27 // pred_region
          %149 = dma.done [#allocation3], 64
        $region32: #{tpu_custom_call.1} parent=27 // pred_fallthru
          _
        %s150 = sand.u32 %s49, 1
        %s151 = scalar_lea.sflag [#allocation6], %s150
        %s152 = sand.u32 %s49, 1
        %s153 = smul.addr %s152, 16
        %s154 = scalar_lea.vmem [#allocation5], %s153
        // Predicated region
        $region33: #{tpu_custom_call.1} parent=27 // pred_check
          %p155 = pneg %p62
        $region34: #{tpu_custom_call.1} parent=27 // pred_check_branch
          %157 = sbr.rel (%p155) target = $region36
        $region35: #{tpu_custom_call.1} parent=27 // pred_region
          %158 = dma.done %s151, 256
        $region36: #{tpu_custom_call.1} parent=27 // pred_fallthru
          _
        %p159 = pneg %p36
        %p160 = pneg %p33
        %s161 = sand.u32 %s49, 1
        %s162 = scalar_lea.sflag [#allocation6], %s161
        %s163 = sand.u32 %s49, 1
        %s164 = smul.addr %s163, 16
        %s165 = scalar_lea.vmem [#allocation5], %s164
        %p166 = pneg %p62
        %p167 = pneg %p59
        %p168 = pneg %p88
        %p169 = pneg %p85
        %s170 = sand.u32 %s75, 1
        %s171 = scalar_lea.sflag [#allocation4], %s170
        %s172 = sand.u32 %s75, 1
        %s173 = smul.addr %s172, 16
        %s174 = scalar_lea.vmem [#allocation7], %s173
        %s175 = smul.u32 2, %s20
        %s176 = smul.u32 2, %s20
        %v177 = vld [vmem:[%s154] sm:$0xff]
        %v178 = vld [vmem:[%s154 + $0x8] sm:$0xff]
        %v179 = vld [vmem:[#allocation2] sm:$0x1]
        %v180 = vlaneseq
        %v181 = vshrl.u32 %v180, 7
        %v182 = vsub.s32 0, %v181
        %v183 = vrot.slane %v179, %v182
        %v184 = vmul.f32 %v177, %v183
        %v185 = vmul.f32 %v178, %v183
        %186 = vrot.lane.b32.xlu0 %v177, 127
        %v187 = vpop.permute.xlu0 %186
        %188 = vrot.lane.b32.xlu0 %v178, 127
        %v189 = vpop.permute.xlu0 %188
        %v190 = vld [vmem:[#allocation2 + $0x1] sm:$0x1]
        %v191 = vlaneseq
        %v192 = vshrl.u32 %v191, 7
        %v193 = vsub.s32 0, %v192
        %v194 = vrot.slane %v190, %v193
        %v195 = vmul.f32 %v187, %v194
        %v196 = vmul.f32 %v189, %v194
        %v197 = vadd.f32 %v184, %v195
        %v198 = vadd.f32 %v185, %v196
        %199 = vrot.lane.b32.xlu0 %v177, 126
        %v200 = vpop.permute.xlu0 %199
        %201 = vrot.lane.b32.xlu0 %v178, 126
        %v202 = vpop.permute.xlu0 %201
        %v203 = vld [vmem:[#allocation2 + $0x2] sm:$0x1]
        %v204 = vlaneseq
        %v205 = vshrl.u32 %v204, 7
        %v206 = vsub.s32 0, %v205
        %v207 = vrot.slane %v203, %v206
        %v208 = vmul.f32 %v200, %v207
        %v209 = vmul.f32 %v202, %v207
        %v210 = vadd.f32 %v197, %v208
        %v211 = vadd.f32 %v198, %v209
        %v212 = vxor.u32 %v210, 2147483648
        %v213 = vxor.u32 %v211, 2147483648
        %v214 = vmul.f32 %v212, 1.442695
        %v215 = vpow.pop %v214
        %v216 = vmul.f32 %v213, 1.442695
        %v217 = vpow.pop %v216
        %v218 = vadd.f32 %v215, 1.0
        %v219 = vadd.f32 %v217, 1.0
        %v220 = vrcp.pop %v218
        %v221 = vmul.f32 1.0, %v220
        %v222 = vrcp.pop %v219
        %v223 = vmul.f32 1.0, %v222
        %224 = vst [vmem:[%s174] sm:$0xff] %v221
        %225 = vst [vmem:[%s174 + $0x8] sm:$0xff] %v223
        %s226 = sand.u32 %s75, 1
        %s227 = scalar_lea.sflag [#allocation4], %s226
        %s228 = sand.u32 %s75, 1
        %s229 = smul.addr %s228, 16
        %s230 = scalar_lea.vmem [#allocation7], %s229
        // Predicated region
        $region37: #{tpu_custom_call.1} parent=27 // pred_check
          %p231 = pneg %p85
        $region38: #{tpu_custom_call.1} parent=27 // pred_check_branch
          %233 = sbr.rel (%p231) target = $region40
        $region39: #{tpu_custom_call.1} parent=27 // pred_region
          %s234 = smul.u32 2, %s20
          %s236 = ssub.s32 256, 256
          %237 = vsyncadd %s227, %s236
          %s238 = smul.addr %s234, 128
          %s239 = scalar_lea.hbm %s2, %s238
          %s240 = sshll.u32 %s230, 4
          %s241 = int_to_ptr.vmem [resolvable:$true] %s240
          %246 = dma.vmem_to_hbm [thread:$0]  %s241, 256, %s239, %s227, 128, 128, 8
        $region40: #{tpu_custom_call.1} parent=27 // pred_fallthru
          _
      $region28: #{tpu_custom_call.1} parent=5 // pred_fallthru
        _
      %p247 = scmp.le.s32.totalorder 2, %s15
      // Predicated region
      $region41: #{tpu_custom_call.1} parent=5 // pred_check
        %p248 = pneg %p247
      $region42: #{tpu_custom_call.1} parent=5 // pred_check_branch
        %250 = sbr.rel (%p248) target = $region44
      $region43: #{tpu_custom_call.1} parent=5 // pred_region
        %s251 = ssub.s32 %s15, 2
        // Predicated region
        $region45: #{tpu_custom_call.1} parent=43 // pred_check
          %p252 = pneg %p91
        $region46: #{tpu_custom_call.1} parent=43 // pred_check_branch
          %254 = sbr.rel (%p252) target = $region48
        $region47: #{tpu_custom_call.1} parent=43 // pred_region
          %s255 = sand.u32 %s76, 1
          %s256 = scalar_lea.sflag [#allocation4], %s255
          %s257 = sand.u32 %s76, 1
          %s258 = smul.addr %s257, 16
          %s259 = scalar_lea.vmem [#allocation7], %s258
          %260 = dma.done %s256, 256
        $region48: #{tpu_custom_call.1} parent=43 // pred_fallthru
          _
      $region44: #{tpu_custom_call.1} parent=5 // pred_fallthru
        _
    $region6: #{tpu_custom_call.1} parent=1 // loop_footer
      %s19 = sadd.s32 1, %s15
    $region7: #{tpu_custom_call.1} parent=1 // loop_footer_branch
      %14 = sbr.rel target = $region3
    $region8: #{tpu_custom_call.1} parent=1 // loop_exit
      _
    %261 = vsyncpa [#allocation3], 1
    %s262 = scalar_lea.sflag [#allocation3], 1
    %263 = vsyncpa %s262, 1
    %264 = vsyncpa [#allocation6], 1
    %s265 = scalar_lea.sflag [#allocation6], 1
    %266 = vsyncpa %s265, 1
    %267 = vsyncpa [#allocation4], 1
    %s268 = scalar_lea.sflag [#allocation4], 1
    %269 = vsyncpa %s268, 1

</llo_original>
